<compile_context>
chip_gen: v5e
topology: v5e:2x2
jax: 0.10.0
libtpu: 0.0.40
codegen_flags: <defaults>
</compile_context>

<pallas_src>
import functools

import jax
import jax.numpy as jnp
from jax.experimental import pallas as pl
from jax.experimental.pallas import tpu as pltpu


def _round_up(n, m):
    return ((n + m - 1) // m) * m


def _mlp_kernel(x_ref, w1_ref, b1_ref, w2_ref, b2_ref, o_ref):
    # First linear + ReLU  (MXU matmul, f32 accumulate; VPU max)
    h = jnp.dot(x_ref[...], w1_ref[...], preferred_element_type=jnp.float32)
    h = jnp.maximum(h + b1_ref[...], 0.0)          # (TB, 256) + (1, 256)
    # Second linear (lane-dense padded N)
    y = jnp.dot(h.astype(w2_ref.dtype), w2_ref[...],
                preferred_element_type=jnp.float32)
    o_ref[...] = (y + b2_ref[...]).astype(o_ref.dtype)


@functools.partial(jax.jit, static_argnames=("block_b",))
def prop_mlp(x, w1_t, b1, w2_t, b2, *, block_b=4096):
    """x: (B, dim_hidden); w1_t: (dim_hidden, 256); b1: (1, 256);
    w2_t: (256, n_targets); b2: (1, n_targets) -> (B, n_targets)."""
    B, dim_hidden = x.shape
    hid = w1_t.shape[1]
    n_targets = w2_t.shape[1]

    # ---- lane-dense output: pad second matmul's N to a multiple of 128 ----
    n_out_p = _round_up(max(n_targets, 128), 128)
    if n_out_p != n_targets:
        w2_p = jnp.zeros((hid, n_out_p), w2_t.dtype).at[:, :n_targets].set(w2_t)
        b2_p = jnp.zeros((1, n_out_p), b2.dtype).at[:, :n_targets].set(b2)
    else:
        w2_p, b2_p = w2_t, b2

    # ---- batch tiling: TB multiple of 8 sublanes, capped by block_b ----
    tb = min(_round_up(block_b, 8), _round_up(B, 8))
    b_pad = _round_up(B, tb)
    if b_pad != B:
        x_p = jnp.zeros((b_pad, dim_hidden), x.dtype).at[:B, :].set(x)
    else:
        x_p = x

    grid = (b_pad // tb,)
    dsize = jnp.dtype(x.dtype).itemsize
    weight_bytes = (w1_t.size + b1.size + w2_p.size + b2_p.size) * dsize
    cost = pl.CostEstimate(
        flops=2 * b_pad * (dim_hidden * hid + hid * n_out_p),
        transcendentals=0,
        bytes_accessed=b_pad * (dim_hidden + n_out_p) * dsize + weight_bytes,
    )

    out_p = pl.pallas_call(
        _mlp_kernel,
        out_shape=jax.ShapeDtypeStruct((b_pad, n_out_p), x.dtype),
        grid=grid,
        in_specs=[
            pl.BlockSpec((tb, dim_hidden), lambda i: (i, 0)),   # x: streamed
            pl.BlockSpec((dim_hidden, hid), lambda i: (0, 0)),  # W1: resident
            pl.BlockSpec((1, hid), lambda i: (0, 0)),           # b1: resident
            pl.BlockSpec((hid, n_out_p), lambda i: (0, 0)),     # W2: resident
            pl.BlockSpec((1, n_out_p), lambda i: (0, 0)),       # b2: resident
        ],
        out_specs=pl.BlockSpec((tb, n_out_p), lambda i: (i, 0)),
        compiler_params=pltpu.CompilerParams(
            dimension_semantics=("parallel",),     # shard batch tiles over TCs
            vmem_limit_bytes=48 * 1024 * 1024,     # past v5e's 16 MiB default
        ),
        cost_estimate=cost,
    )(x_p, w1_t, b1, w2_p, b2_p)

    # Drop batch padding and lane padding.
    return out_p[:B, :n_targets]


def init_params(key, dim_hidden, n_targets, dtype=jnp.float32):
    """Mirror nn.Linear default init (uniform(-1/sqrt(fan_in), 1/sqrt(fan_in)))."""
    k1, k2, k3, k4 = jax.random.split(key, 4)
    bound1 = 1.0 / (dim_hidden ** 0.5)
    bound2 = 1.0 / (256 ** 0.5)
    # Stored pre-transposed: (in, out)
    w1_t = jax.random.uniform(k1, (dim_hidden, 256), dtype, -bound1, bound1)
    b1 = jax.random.uniform(k2, (1, 256), dtype, -bound1, bound1)
    w2_t = jax.random.uniform(k3, (256, n_targets), dtype, -bound2, bound2)
    b2 = jax.random.uniform(k4, (1, n_targets), dtype, -bound2, bound2)
    return w1_t, b1, w2_t, b2


def _ref(x, w1_t, b1, w2_t, b2):
    return jnp.maximum(x @ w1_t + b1, 0.0) @ w2_t + b2


if __name__ == "__main__":
    dim_hidden = 32
    n_targets = 4

    key = jax.random.PRNGKey(0)
    kx, kx2, kp = jax.random.split(key, 3)
    w1_t, b1, w2_t, b2 = init_params(kp, dim_hidden, n_targets)

    # Case 1: small batch, divisible by sublane width.
    x = jax.random.normal(kx, (8, dim_hidden), jnp.float32)
    out = jax.block_until_ready(prop_mlp(x, w1_t, b1, w2_t, b2))
    ref = _ref(x, w1_t, b1, w2_t, b2)
    assert out.shape == (8, n_targets)
    assert jnp.allclose(out, ref, atol=1e-5, rtol=1e-5)

    # Case 2: ragged batch (exercises wrapper-side row padding + slicing).
    x2 = jax.random.normal(kx2, (13, dim_hidden), jnp.float32)
    out2 = jax.block_until_ready(prop_mlp(x2, w1_t, b1, w2_t, b2))
    ref2 = _ref(x2, w1_t, b1, w2_t, b2)
    assert out2.shape == (13, n_targets)
    assert jnp.allclose(out2, ref2, atol=1e-5, rtol=1e-5)

    print("KERNEL_OK")
</pallas_src>

<mosaic_0001>
module attributes {stable_mosaic.version = 11 : i64} {
  func.func @_mlp_kernel(%arg0: i32, %arg1: memref<8x32xf32, #tpu.memory_space<vmem>>, %arg2: memref<32x256xf32, #tpu.memory_space<vmem>>, %arg3: memref<1x256xf32, #tpu.memory_space<vmem>>, %arg4: memref<256x128xf32, #tpu.memory_space<vmem>>, %arg5: memref<1x128xf32, #tpu.memory_space<vmem>>, %arg6: memref<8x128xf32, #tpu.memory_space<vmem>>) attributes {dimension_semantics = [#tpu.dimension_semantics<parallel>], iteration_bounds = array<i64: 1>, scalar_prefetch = 0 : i64, scratch_operands = 0 : i64, tpu.core_type = #tpu.core_type<tc>, window_params = [{transform_indices = @transform_0, window_bounds = array<i64: 8, 32>}, {pipeline_mode = #tpu.pipeline_mode<synchronous>, transform_indices = @transform_1, window_bounds = array<i64: 32, 256>}, {pipeline_mode = #tpu.pipeline_mode<synchronous>, transform_indices = @transform_2, window_bounds = array<i64: 1, 256>}, {pipeline_mode = #tpu.pipeline_mode<synchronous>, transform_indices = @transform_3, window_bounds = array<i64: 256, 128>}, {pipeline_mode = #tpu.pipeline_mode<synchronous>, transform_indices = @transform_4, window_bounds = array<i64: 1, 128>}, {transform_indices = @transform_5, window_bounds = array<i64: 8, 128>}]} {
    %c0 = arith.constant 0 : index
    %c0_0 = arith.constant 0 : index
    %0 = vector.load %arg1[%c0, %c0_0] : memref<8x32xf32, #tpu.memory_space<vmem>>, vector<8x32xf32>
    %c0_1 = arith.constant 0 : index
    %c0_2 = arith.constant 0 : index
    %1 = vector.load %arg2[%c0_1, %c0_2] : memref<32x256xf32, #tpu.memory_space<vmem>>, vector<32x256xf32>
    %cst = arith.constant dense<0.000000e+00> : vector<8x256xf32>
    %2 = tpu.matmul %0, %1, %cst {dimension_numbers = #tpu.dot_dimension_numbers<[1], [0], [0], [1], [0, 0, 1, 1], [], []>} : vector<8x32xf32>, vector<32x256xf32>, vector<8x256xf32> -> vector<8x256xf32>
    %c0_3 = arith.constant 0 : index
    %c0_4 = arith.constant 0 : index
    %3 = vector.load %arg3[%c0_3, %c0_4] : memref<1x256xf32, #tpu.memory_space<vmem>>, vector<1x256xf32>
    %4 = vector.broadcast %3 : vector<1x256xf32> to vector<8x256xf32>
    %5 = arith.addf %2, %4 : vector<8x256xf32>
    %cst_5 = arith.constant 0.000000e+00 : f32
    %6 = vector.broadcast %cst_5 : f32 to vector<8x256xf32>
    %7 = arith.maximumf %5, %6 : vector<8x256xf32>
    %c0_6 = arith.constant 0 : index
    %c0_7 = arith.constant 0 : index
    %8 = vector.load %arg4[%c0_6, %c0_7] : memref<256x128xf32, #tpu.memory_space<vmem>>, vector<256x128xf32>
    %cst_8 = arith.constant dense<0.000000e+00> : vector<8x128xf32>
    %9 = tpu.matmul %7, %8, %cst_8 {dimension_numbers = #tpu.dot_dimension_numbers<[1], [0], [0], [1], [0, 0, 1, 1], [], []>} : vector<8x256xf32>, vector<256x128xf32>, vector<8x128xf32> -> vector<8x128xf32>
    %c0_9 = arith.constant 0 : index
    %c0_10 = arith.constant 0 : index
    %10 = vector.load %arg5[%c0_9, %c0_10] : memref<1x128xf32, #tpu.memory_space<vmem>>, vector<1x128xf32>
    %11 = vector.broadcast %10 : vector<1x128xf32> to vector<8x128xf32>
    %12 = arith.addf %9, %11 : vector<8x128xf32>
    %c0_11 = arith.constant 0 : index
    %c0_12 = arith.constant 0 : index
    %13 = vector.load %arg6[%c0_11, %c0_12] : memref<8x128xf32, #tpu.memory_space<vmem>>, vector<8x128xf32>
    tpu.vector_store %arg6[%c0_11, %c0_12], %12 {strides = array<i32>} : memref<8x128xf32, #tpu.memory_space<vmem>>, vector<8x128xf32>,
    return
  }
  func.func @transform_0(%arg0: i32) -> (i32, i32) {
    %c0_i32 = arith.constant 0 : i32
    %c0_i32_0 = arith.constant 0 : i32
    return %arg0, %c0_i32 : i32, i32
  }
  func.func @transform_1(%arg0: i32) -> (i32, i32) {
    %c0_i32 = arith.constant 0 : i32
    %c0_i32_0 = arith.constant 0 : i32
    %c0_i32_1 = arith.constant 0 : i32
    return %c0_i32, %c0_i32_0 : i32, i32
  }
  func.func @transform_2(%arg0: i32) -> (i32, i32) {
    %c0_i32 = arith.constant 0 : i32
    %c0_i32_0 = arith.constant 0 : i32
    %c0_i32_1 = arith.constant 0 : i32
    return %c0_i32, %c0_i32_0 : i32, i32
  }
  func.func @transform_3(%arg0: i32) -> (i32, i32) {
    %c0_i32 = arith.constant 0 : i32
    %c0_i32_0 = arith.constant 0 : i32
    %c0_i32_1 = arith.constant 0 : i32
    return %c0_i32, %c0_i32_0 : i32, i32
  }
  func.func @transform_4(%arg0: i32) -> (i32, i32) {
    %c0_i32 = arith.constant 0 : i32
    %c0_i32_0 = arith.constant 0 : i32
    %c0_i32_1 = arith.constant 0 : i32
    return %c0_i32, %c0_i32_0 : i32, i32
  }
  func.func @transform_5(%arg0: i32) -> (i32, i32) {
    %c0_i32 = arith.constant 0 : i32
    %c0_i32_0 = arith.constant 0 : i32
    return %arg0, %c0_i32 : i32, i32
  }
}

</mosaic_0001>

<llo_original>
// kernel: prop_mlp.1
$region0: #{prop_mlp.1}
  #allocation0 [shape = 'u32[]', space=smem, size = 0x4, offset = 0x4, fixed_abs, tag = 'smem constant byte address 0x4 - core index']
  #allocation1 [shape = 'u32[72,128]{1,0:T(1,128)}', space=vmem, size = 0x9000, scoped, tag = 'internal scratch']
  %s0 = inlined_call_operand.vmem [shape: f32[8,32], index: 0, kind: input, shape index: {}]
  %s1 = inlined_call_operand.vmem [shape: f32[32,256], index: 1, kind: input, shape index: {}]
  %s2 = inlined_call_operand.vmem [shape: f32[1,256], index: 2, kind: input, shape index: {}]
  %s3 = inlined_call_operand.vmem [shape: f32[256,128], index: 3, kind: input, shape index: {}]
  %s4 = inlined_call_operand.vmem [shape: f32[1,128], index: 4, kind: input, shape index: {}]
  %s5 = inlined_call_operand.vmem [shape: f32[8,128], index: 5, kind: output, shape index: {}]
  %s6 = sld [smem:[#allocation0]]
  $region30: #{prop_mlp.1} parent=0
    _
  %s8 = ssub.s32 1, %s6
  %s9 = scalar_select 0, %s8, %s6
  // Predicated region
  $region2: #{prop_mlp.1} parent=0 // pred_check
    _
  $region3: #{prop_mlp.1} parent=0 // pred_check_branch
    %11 = sbr.rel (0) target = $region5
  $region4: #{prop_mlp.1} parent=0 // pred_region
    _
  $region5: #{prop_mlp.1} parent=0 // pred_fallthru
    _
  // Predicated region
  $region6: #{prop_mlp.1} parent=0 // pred_check
    _
  $region7: #{prop_mlp.1} parent=0 // pred_check_branch
    %13 = sbr.rel (0) target = $region9
  $region8: #{prop_mlp.1} parent=0 // pred_region
    _
  $region9: #{prop_mlp.1} parent=0 // pred_fallthru
    _
  // Predicated region
  $region10: #{prop_mlp.1} parent=0 // pred_check
    _
  $region11: #{prop_mlp.1} parent=0 // pred_check_branch
    %15 = sbr.rel (0) target = $region13
  $region12: #{prop_mlp.1} parent=0 // pred_region
    _
  $region13: #{prop_mlp.1} parent=0 // pred_fallthru
    _
  // Predicated region
  $region14: #{prop_mlp.1} parent=0 // pred_check
    _
  $region15: #{prop_mlp.1} parent=0 // pred_check_branch
    %17 = sbr.rel (0) target = $region17
  $region16: #{prop_mlp.1} parent=0 // pred_region
    _
  $region17: #{prop_mlp.1} parent=0 // pred_fallthru
    _
  // Predicated region
  $region18: #{prop_mlp.1} parent=0 // pred_check
    _
  $region19: #{prop_mlp.1} parent=0 // pred_check_branch
    %19 = sbr.rel (0) target = $region21
  $region20: #{prop_mlp.1} parent=0 // pred_region
    _
  $region21: #{prop_mlp.1} parent=0 // pred_fallthru
    _
  %v20 = vld [vmem:[%s0] sm:$0xff]
  %v21 = vld [vmem:[%s1] sm:$0xff]
  %v22 = vld [vmem:[%s1 + $0x8] sm:$0xff]
  %v23 = vld [vmem:[%s1 + $0x10] sm:$0xff]
  %v24 = vld [vmem:[%s1 + $0x18] sm:$0xff]
  %v25 = vld [vmem:[%s1 + $0x20] sm:$0xff]
  %v26 = vld [vmem:[%s1 + $0x28] sm:$0xff]
  %v27 = vld [vmem:[%s1 + $0x30] sm:$0xff]
  %v28 = vld [vmem:[%s1 + $0x38] sm:$0xff]
  %v29 = vld [vmem:[%s2] sm:$0x3]
  %v31 = vperm.slane %v29, 0
  %v32 = vperm.slane %v29, 1
  %vm35 = vcmask 261120
  %v37 = vsel %vm35, %v20, 0
  %39 = vmatpush.msra.mxu0 0.0
  %40 = vmatpush.msra.mxu0 0.0
  %41 = vmatpush.msra.mxu0 0.0
  %42 = vmatpush.msra.mxu0 0.0
  %43 = vmatpush.msra.mxu0 0.0
  %44 = vmatpush.msra.mxu0 0.0
  %45 = vmatpush.msra.mxu0 0.0
  %46 = vmatpush.msra.mxu0 0.0
  %47 = vmatpush.msra.mxu0 0.0
  %48 = vmatpush.msra.mxu0 0.0
  %49 = vmatpush.msra.mxu0 0.0
  %50 = vmatpush.msra.mxu0 0.0
  %51 = vmatpush.msra.mxu0 %v27
  %52 = vmatpush.msra.mxu0 %v25
  %53 = vmatpush.msra.mxu0 %v23
  %54 = vmatpush.msra.mxu0 %v21
  %55 = vmatmul.f32.gmra.mxu0 %v37
  %v56 = vpop.f32.mrf.mxu0
  %v57 = vadd.f32 %v31, %v56
  %58 = vdwg.mxu0
  %59 = vmatpush.msra.mxu0 0.0
  %60 = vmatpush.msra.mxu0 0.0
  %61 = vmatpush.msra.mxu0 0.0
  %62 = vmatpush.msra.mxu0 0.0
  %63 = vmatpush.msra.mxu0 0.0
  %64 = vmatpush.msra.mxu0 0.0
  %65 = vmatpush.msra.mxu0 0.0
  %66 = vmatpush.msra.mxu0 0.0
  %67 = vmatpush.msra.mxu0 0.0
  %68 = vmatpush.msra.mxu0 0.0
  %69 = vmatpush.msra.mxu0 0.0
  %70 = vmatpush.msra.mxu0 0.0
  %71 = vmatpush.msra.mxu0 %v28
  %72 = vmatpush.msra.mxu0 %v26
  %73 = vmatpush.msra.mxu0 %v24
  %74 = vmatpush.msra.mxu0 %v22
  %75 = vmatmul.f32.gmra.mxu0 %v37
  %v76 = vpop.f32.mrf.mxu0
  %v77 = vadd.f32 %v32, %v76
  %78 = vdwg.mxu0
  %v79 = vmax.f32 %v57, 0.0
  %v80 = vmax.f32 %v77, 0.0
  %v81 = vld [vmem:[%s3] sm:$0xff]
  %v82 = vld [vmem:[%s3 + $0x8] sm:$0xff]
  %v83 = vld [vmem:[%s3 + $0x10] sm:$0xff]
  %v84 = vld [vmem:[%s3 + $0x18] sm:$0xff]
  %v85 = vld [vmem:[%s3 + $0x20] sm:$0xff]
  %v86 = vld [vmem:[%s3 + $0x28] sm:$0xff]
  %v87 = vld [vmem:[%s3 + $0x30] sm:$0xff]
  %v88 = vld [vmem:[%s3 + $0x38] sm:$0xff]
  %v89 = vld [vmem:[%s3 + $0x40] sm:$0xff]
  %v90 = vld [vmem:[%s3 + $0x48] sm:$0xff]
  %v91 = vld [vmem:[%s3 + $0x50] sm:$0xff]
  %v92 = vld [vmem:[%s3 + $0x58] sm:$0xff]
  %v93 = vld [vmem:[%s3 + $0x60] sm:$0xff]
  %v94 = vld [vmem:[%s3 + $0x68] sm:$0xff]
  %v95 = vld [vmem:[%s3 + $0x70] sm:$0xff]
  %v96 = vld [vmem:[%s3 + $0x78] sm:$0xff]
  %v97 = vld [vmem:[%s3 + $0x80] sm:$0xff]
  %v98 = vld [vmem:[%s3 + $0x88] sm:$0xff]
  %v99 = vld [vmem:[%s3 + $0x90] sm:$0xff]
  %v100 = vld [vmem:[%s3 + $0x98] sm:$0xff]
  %v101 = vld [vmem:[%s3 + $0xa0] sm:$0xff]
  %v102 = vld [vmem:[%s3 + $0xa8] sm:$0xff]
  %v103 = vld [vmem:[%s3 + $0xb0] sm:$0xff]
  %v104 = vld [vmem:[%s3 + $0xb8] sm:$0xff]
  %v105 = vld [vmem:[%s3 + $0xc0] sm:$0xff]
  %v106 = vld [vmem:[%s3 + $0xc8] sm:$0xff]
  %v107 = vld [vmem:[%s3 + $0xd0] sm:$0xff]
  %v108 = vld [vmem:[%s3 + $0xd8] sm:$0xff]
  %v109 = vld [vmem:[%s3 + $0xe0] sm:$0xff]
  %v110 = vld [vmem:[%s3 + $0xe8] sm:$0xff]
  %v111 = vld [vmem:[%s3 + $0xf0] sm:$0xff]
  %v112 = vld [vmem:[%s3 + $0xf8] sm:$0xff]
  %v113 = vld [vmem:[%s4] sm:$0x1]
  %v115 = vperm.slane %v113, 0
  %117 = vmatpush.msra.mxu0 %v96
  %118 = vmatpush.msra.mxu0 %v95
  %119 = vmatpush.msra.mxu0 %v94
  %120 = vmatpush.msra.mxu0 %v93
  %121 = vmatpush.msra.mxu0 %v92
  %122 = vmatpush.msra.mxu0 %v91
  %123 = vmatpush.msra.mxu0 %v90
  %124 = vmatpush.msra.mxu0 %v89
  %125 = vmatpush.msra.mxu0 %v88
  %126 = vmatpush.msra.mxu0 %v87
  %127 = vmatpush.msra.mxu0 %v86
  %128 = vmatpush.msra.mxu0 %v85
  %129 = vmatpush.msra.mxu0 %v84
  %130 = vmatpush.msra.mxu0 %v83
  %131 = vmatpush.msra.mxu0 %v82
  %132 = vmatpush.msra.mxu0 %v81
  %133 = vmatmul.f32.gmra.mxu0 %v79
  %v134 = vpop.f32.mrf.mxu0
  %v135 = vadd.f32 %v115, %v134
  %136 = vdwg.mxu0
  %137 = vmatpush.msra.mxu0 %v112
  %138 = vmatpush.msra.mxu0 %v111
  %139 = vmatpush.msra.mxu0 %v110
  %140 = vmatpush.msra.mxu0 %v109
  %141 = vmatpush.msra.mxu0 %v108
  %142 = vmatpush.msra.mxu0 %v107
  %143 = vmatpush.msra.mxu0 %v106
  %144 = vmatpush.msra.mxu0 %v105
  %145 = vmatpush.msra.mxu0 %v104
  %146 = vmatpush.msra.mxu0 %v103
  %147 = vmatpush.msra.mxu0 %v102
  %148 = vmatpush.msra.mxu0 %v101
  %149 = vmatpush.msra.mxu0 %v100
  %150 = vmatpush.msra.mxu0 %v99
  %151 = vmatpush.msra.mxu0 %v98
  %152 = vmatpush.msra.mxu0 %v97
  %153 = vmatmul.f32.gmra.mxu0 %v80
  %v154 = vpop.f32.mrf.mxu0
  %v155 = vadd.f32 %v135, %v154
  %156 = vdwg.mxu0
  %157 = vst [vmem:[%s5] sm:$0xff] %v155
  // Predicated region
  $region22: #{prop_mlp.1} parent=0 // pred_check
    _
  $region23: #{prop_mlp.1} parent=0 // pred_check_branch
    %159 = sbr.rel (0) target = $region25
  $region24: #{prop_mlp.1} parent=0 // pred_region
    _
  $region25: #{prop_mlp.1} parent=0 // pred_fallthru
    _
  // Predicated region
  $region26: #{prop_mlp.1} parent=0 // pred_check
    _
  $region27: #{prop_mlp.1} parent=0 // pred_check_branch
    %161 = sbr.rel (0) target = $region29
  $region28: #{prop_mlp.1} parent=0 // pred_region
    _
  $region29: #{prop_mlp.1} parent=0 // pred_fallthru
    _

</llo_original>
